<compile_context>
chip_gen: v7x
topology: tpu7x:2x2x1
jax: 0.10.0
libtpu: 0.0.40
codegen_flags: <defaults>
</compile_context>

<pallas_src>
import functools

import jax
import jax.numpy as jnp
import numpy as np
from jax.experimental import pallas as pl
from jax.experimental.pallas import tpu as pltpu

_LANES = 128       # vreg lane width
_SUBLANE = 32      # sublane granularity that tiles cleanly for f32/bf16/int8
_NUM_CORES = 2     # leading "parallel" grid axis (2 TCs on v7x; serial elsewhere)


def _masked_ce_kernel(x0_ref, x1_ref, s_ref, loss_out, cnt_out, loss_acc, cnt_acc):
    # Zero this core's accumulators on its first row-tile.
    @pl.when(pl.program_id(1) == 0)
    def _():
        loss_acc[...] = jnp.zeros_like(loss_acc)
        cnt_acc[...] = jnp.zeros_like(cnt_acc)

    # s in {-1, 0, +1}: sign = (2*target - 1), zero where mask is False / padded.
    s = s_ref[...].astype(jnp.float32)          # (T, 128)
    m = jnp.abs(s)                              # mask as f32
    d = x0_ref[...] - x1_ref[...]               # (T, 128) class-0 minus class-1 logit
    z = s * d                                   # (2t-1)*(x0-x1) on selected rows, else 0

    # Stable softplus: CE_i = log(1 + exp(z_i)) = max(z,0) + log(1 + exp(-|z|)).
    # Unselected / padded lanes contribute softplus(0) * 0 = 0.
    per = (jnp.maximum(z, 0.0) + jnp.log(1.0 + jnp.exp(-jnp.abs(z)))) * m

    # Pure-VPU elementwise accumulation; no cross-lane work in the steady state.
    loss_acc[...] += per
    cnt_acc[...] += m

    # Epilogue: one sublane reduction per core; final mean happens in the wrapper.
    @pl.when(pl.program_id(1) == pl.num_programs(1) - 1)
    def _():
        loss_out[...] = jnp.sum(loss_acc[...], axis=0, keepdims=True)[None]
        cnt_out[...] = jnp.sum(cnt_acc[...], axis=0, keepdims=True)[None]


def _pad_to_rows(v, rows_pad):
    """Pad a 1-D array with zeros and reshape it lane-dense to (rows_pad, 128)."""
    pad = rows_pad * _LANES - v.shape[0]
    if pad:
        v = jnp.pad(v, (0, pad))
    return v.reshape(rows_pad, _LANES)


@functools.partial(jax.jit, static_argnames=("max_tile_rows",))
def masked_bce_with_logits_loss(logits, target, mask, *, max_tile_rows=512):
    """Pallas equivalent of MaskedBCEWithLogitsLoss.forward (reduction='mean')."""
    if logits.ndim != 2:
        raise ValueError(f"expected input to have 2 dimensions, got {logits.ndim}.")
    if target.ndim != 1:
        raise ValueError(f"expected target to have 1 dimension, got {target.ndim}.")
    if mask.ndim != 1:
        raise ValueError(f"expected mask to have 1 dimension, got {mask.ndim}.")
    if logits.shape[-1] != 2:
        raise ValueError(
            f"the final dimension of `input` must be 2, got {logits.shape[-1]}.")
    # TODO(synk): per-class `weights`, reduction != 'mean', and backpack.extend
    # are not supported; this matches CrossEntropyLoss(weight=None, 'mean').

    n = logits.shape[0]

    # ---- glue: lane-dense (rows, 128) layout; padded rows carry s == 0 ----
    max_tile_rows = max(_SUBLANE, (max_tile_rows // _SUBLANE) * _SUBLANE)
    rows = pl.cdiv(n, _LANES)
    tile_rows = min(max_tile_rows,
                    pl.cdiv(pl.cdiv(rows, _NUM_CORES), _SUBLANE) * _SUBLANE)
    tiles_per_core = pl.cdiv(rows, _NUM_CORES * tile_rows)
    rows_pad = _NUM_CORES * tiles_per_core * tile_rows

    x0 = _pad_to_rows(logits[:, 0].astype(jnp.float32), rows_pad)
    x1 = _pad_to_rows(logits[:, 1].astype(jnp.float32), rows_pad)
    sgn = mask.astype(jnp.float32) * (2.0 * target.astype(jnp.float32) - 1.0)
    s = _pad_to_rows(sgn.astype(jnp.bfloat16), rows_pad)   # 2 B/row aux traffic

    row_spec = pl.BlockSpec((tile_rows, _LANES),
                            lambda c, i: (c * tiles_per_core + i, 0))
    part_spec = pl.BlockSpec((1, 1, _LANES), lambda c, i: (c, 0, 0))

    loss_parts, cnt_parts = pl.pallas_call(
        _masked_ce_kernel,
        out_shape=(
            jax.ShapeDtypeStruct((_NUM_CORES, 1, _LANES), jnp.float32),
            jax.ShapeDtypeStruct((_NUM_CORES, 1, _LANES), jnp.float32),
        ),
        grid=(_NUM_CORES, tiles_per_core),
        in_specs=[row_spec, row_spec, row_spec],
        out_specs=[part_spec, part_spec],
        scratch_shapes=[
            pltpu.VMEM((tile_rows, _LANES), jnp.float32),   # per-lane loss partials
            pltpu.VMEM((tile_rows, _LANES), jnp.float32),   # per-lane mask counts
        ],
        compiler_params=pltpu.CompilerParams(
            dimension_semantics=("parallel", "arbitrary"),
        ),
    )(x0, x1, s)

    # Tiny final cross-lane / cross-core combine + mean over selected rows.
    # NOTE: an all-False mask gives 0/0 -> NaN, mirroring PyTorch on an empty
    # selection.
    return jnp.sum(loss_parts) / jnp.sum(cnt_parts)


def _reference(logits, target, mask):
    """Pure-JAX reference matching torch's CrossEntropyLoss on masked rows."""
    x = logits.astype(jnp.float32)
    lse = jax.nn.logsumexp(x, axis=-1)
    chosen = jnp.take_along_axis(x, target[:, None].astype(jnp.int32), axis=-1)[:, 0]
    m = mask.astype(jnp.float32)
    return jnp.sum((lse - chosen) * m) / jnp.sum(m)


if __name__ == "__main__":
    key = jax.random.PRNGKey(0)
    k1, k2, k3 = jax.random.split(key, 3)

    N = 16
    logits = jax.random.normal(k1, (N, 2), dtype=jnp.float32)
    target = jax.random.randint(k2, (N,), 0, 2, dtype=jnp.int32)
    mask = jax.random.bernoulli(k3, 0.6, (N,))
    # Guarantee at least one selected row (PyTorch would NaN on empty selection).
    mask = mask.at[0].set(True)

    loss = masked_bce_with_logits_loss(logits, target, mask)
    jax.block_until_ready(loss)

    ref = _reference(logits, target, mask)
    np.testing.assert_allclose(np.asarray(loss), np.asarray(ref), rtol=1e-5, atol=1e-5)

    print("KERNEL_OK")
</pallas_src>

<mosaic_0001>
module attributes {stable_mosaic.version = 11 : i64} {
  func.func @_masked_ce_kernel(%arg0: i32, %arg1: i32, %arg2: memref<32x128xf32, #tpu.memory_space<vmem>>, %arg3: memref<32x128xf32, #tpu.memory_space<vmem>>, %arg4: memref<32x128xbf16, #tpu.memory_space<vmem>>, %arg5: memref<1x1x128xf32, #tpu.memory_space<vmem>>, %arg6: memref<1x1x128xf32, #tpu.memory_space<vmem>>, %arg7: memref<32x128xf32, #tpu.memory_space<vmem>>, %arg8: memref<32x128xf32, #tpu.memory_space<vmem>>) attributes {dimension_semantics = [#tpu.dimension_semantics<parallel>, #tpu.dimension_semantics<arbitrary>], iteration_bounds = array<i64: 2, 1>, scalar_prefetch = 0 : i64, scratch_operands = 2 : i64, tpu.core_type = #tpu.core_type<tc>, window_params = [{transform_indices = @transform_0, window_bounds = array<i64: 32, 128>}, {transform_indices = @transform_1, window_bounds = array<i64: 32, 128>}, {transform_indices = @transform_2, window_bounds = array<i64: 32, 128>}, {transform_indices = @transform_3, window_bounds = array<i64: 1, 1, 128>}, {transform_indices = @transform_4, window_bounds = array<i64: 1, 1, 128>}]} {
    %c0_i32 = arith.constant 0 : i32
    %0 = arith.cmpi eq, %arg1, %c0_i32 : i32
    %1 = arith.extui %0 : i1 to i32
    %c0_i32_0 = arith.constant 0 : i32
    %2 = arith.cmpi ne, %1, %c0_i32_0 : i32
    scf.if %2 {
      %cst_18 = arith.constant 0.000000e+00 : f32
      %30 = vector.broadcast %cst_18 : f32 to vector<32x128xf32>
      %c0_19 = arith.constant 0 : index
      %c0_20 = arith.constant 0 : index
      %31 = vector.load %arg7[%c0_19, %c0_20] : memref<32x128xf32, #tpu.memory_space<vmem>>, vector<32x128xf32>
      tpu.vector_store %arg7[%c0_19, %c0_20], %30 {strides = array<i32>} : memref<32x128xf32, #tpu.memory_space<vmem>>, vector<32x128xf32>,
      %cst_21 = arith.constant 0.000000e+00 : f32
      %32 = vector.broadcast %cst_21 : f32 to vector<32x128xf32>
      %c0_22 = arith.constant 0 : index
      %c0_23 = arith.constant 0 : index
      %33 = vector.load %arg8[%c0_22, %c0_23] : memref<32x128xf32, #tpu.memory_space<vmem>>, vector<32x128xf32>
      tpu.vector_store %arg8[%c0_22, %c0_23], %32 {strides = array<i32>} : memref<32x128xf32, #tpu.memory_space<vmem>>, vector<32x128xf32>,
    } else {
    }
    %c0 = arith.constant 0 : index
    %c0_1 = arith.constant 0 : index
    %3 = vector.load %arg4[%c0, %c0_1] : memref<32x128xbf16, #tpu.memory_space<vmem>>, vector<32x128xbf16>
    %4 = arith.extf %3 : vector<32x128xbf16> to vector<32x128xf32>
    %5 = math.absf %4 : vector<32x128xf32>
    %c0_2 = arith.constant 0 : index
    %c0_3 = arith.constant 0 : index
    %6 = vector.load %arg2[%c0_2, %c0_3] : memref<32x128xf32, #tpu.memory_space<vmem>>, vector<32x128xf32>
    %c0_4 = arith.constant 0 : index
    %c0_5 = arith.constant 0 : index
    %7 = vector.load %arg3[%c0_4, %c0_5] : memref<32x128xf32, #tpu.memory_space<vmem>>, vector<32x128xf32>
    %8 = arith.subf %6, %7 : vector<32x128xf32>
    %9 = arith.mulf %4, %8 : vector<32x128xf32>
    %cst = arith.constant 0.000000e+00 : f32
    %10 = vector.broadcast %cst : f32 to vector<32x128xf32>
    %11 = arith.maximumf %9, %10 : vector<32x128xf32>
    %12 = math.absf %9 : vector<32x128xf32>
    %cst_6 = arith.constant 0.000000e+00 : f32
    %13 = vector.broadcast %cst_6 : f32 to vector<32x128xf32>
    %14 = arith.subf %13, %12 : vector<32x128xf32>
    %15 = math.exp %14 : vector<32x128xf32>
    %cst_7 = arith.constant 1.000000e+00 : f32
    %16 = vector.broadcast %cst_7 : f32 to vector<32x128xf32>
    %17 = arith.addf %16, %15 : vector<32x128xf32>
    %18 = math.log %17 : vector<32x128xf32>
    %19 = arith.addf %11, %18 : vector<32x128xf32>
    %20 = arith.mulf %19, %5 : vector<32x128xf32>
    %c0_8 = arith.constant 0 : index
    %c0_9 = arith.constant 0 : index
    %21 = vector.load %arg7[%c0_8, %c0_9] : memref<32x128xf32, #tpu.memory_space<vmem>>, vector<32x128xf32>
    %22 = arith.addf %21, %20 : vector<32x128xf32>
    %c0_10 = arith.constant 0 : index
    %c0_11 = arith.constant 0 : index
    %23 = vector.load %arg7[%c0_10, %c0_11] : memref<32x128xf32, #tpu.memory_space<vmem>>, vector<32x128xf32>
    tpu.vector_store %arg7[%c0_10, %c0_11], %22 {strides = array<i32>} : memref<32x128xf32, #tpu.memory_space<vmem>>, vector<32x128xf32>,
    %c0_12 = arith.constant 0 : index
    %c0_13 = arith.constant 0 : index
    %24 = vector.load %arg8[%c0_12, %c0_13] : memref<32x128xf32, #tpu.memory_space<vmem>>, vector<32x128xf32>
    %25 = arith.addf %24, %5 : vector<32x128xf32>
    %c0_14 = arith.constant 0 : index
    %c0_15 = arith.constant 0 : index
    %26 = vector.load %arg8[%c0_14, %c0_15] : memref<32x128xf32, #tpu.memory_space<vmem>>, vector<32x128xf32>
    tpu.vector_store %arg8[%c0_14, %c0_15], %25 {strides = array<i32>} : memref<32x128xf32, #tpu.memory_space<vmem>>, vector<32x128xf32>,
    %c0_i32_16 = arith.constant 0 : i32
    %27 = arith.cmpi eq, %arg1, %c0_i32_16 : i32
    %28 = arith.extui %27 : i1 to i32
    %c0_i32_17 = arith.constant 0 : i32
    %29 = arith.cmpi ne, %28, %c0_i32_17 : i32
    scf.if %29 {
      %c0_18 = arith.constant 0 : index
      %c0_19 = arith.constant 0 : index
      %30 = vector.load %arg7[%c0_18, %c0_19] : memref<32x128xf32, #tpu.memory_space<vmem>>, vector<32x128xf32>
      %cst_20 = arith.constant dense<0.000000e+00> : vector<128xf32>
      %31 = vector.multi_reduction <add>, %30, %cst_20 [0] : vector<32x128xf32> to vector<128xf32>
      %32 = vector.shape_cast %31 : vector<128xf32> to vector<1x128xf32>
      %33 = vector.shape_cast %32 : vector<1x128xf32> to vector<1x1x128xf32>
      %c0_21 = arith.constant 0 : index
      %c0_22 = arith.constant 0 : index
      %c0_23 = arith.constant 0 : index
      %34 = vector.load %arg5[%c0_21, %c0_22, %c0_23] : memref<1x1x128xf32, #tpu.memory_space<vmem>>, vector<1x1x128xf32>
      tpu.vector_store %arg5[%c0_21, %c0_22, %c0_23], %33 {strides = array<i32>} : memref<1x1x128xf32, #tpu.memory_space<vmem>>, vector<1x1x128xf32>,
      %c0_24 = arith.constant 0 : index
      %c0_25 = arith.constant 0 : index
      %35 = vector.load %arg8[%c0_24, %c0_25] : memref<32x128xf32, #tpu.memory_space<vmem>>, vector<32x128xf32>
      %cst_26 = arith.constant dense<0.000000e+00> : vector<128xf32>
      %36 = vector.multi_reduction <add>, %35, %cst_26 [0] : vector<32x128xf32> to vector<128xf32>
      %37 = vector.shape_cast %36 : vector<128xf32> to vector<1x128xf32>
      %38 = vector.shape_cast %37 : vector<1x128xf32> to vector<1x1x128xf32>
      %c0_27 = arith.constant 0 : index
      %c0_28 = arith.constant 0 : index
      %c0_29 = arith.constant 0 : index
      %39 = vector.load %arg6[%c0_27, %c0_28, %c0_29] : memref<1x1x128xf32, #tpu.memory_space<vmem>>, vector<1x1x128xf32>
      tpu.vector_store %arg6[%c0_27, %c0_28, %c0_29], %38 {strides = array<i32>} : memref<1x1x128xf32, #tpu.memory_space<vmem>>, vector<1x1x128xf32>,
    } else {
    }
    return
  }
  func.func @transform_0(%arg0: i32, %arg1: i32) -> (i32, i32) {
    %c1_i32 = arith.constant 1 : i32
    %0 = arith.muli %arg0, %c1_i32 : i32
    %1 = arith.addi %0, %arg1 : i32
    %c0_i32 = arith.constant 0 : i32
    %c0_i32_0 = arith.constant 0 : i32
    return %1, %c0_i32 : i32, i32
  }
  func.func @transform_1(%arg0: i32, %arg1: i32) -> (i32, i32) {
    %c1_i32 = arith.constant 1 : i32
    %0 = arith.muli %arg0, %c1_i32 : i32
    %1 = arith.addi %0, %arg1 : i32
    %c0_i32 = arith.constant 0 : i32
    %c0_i32_0 = arith.constant 0 : i32
    return %1, %c0_i32 : i32, i32
  }
  func.func @transform_2(%arg0: i32, %arg1: i32) -> (i32, i32) {
    %c1_i32 = arith.constant 1 : i32
    %0 = arith.muli %arg0, %c1_i32 : i32
    %1 = arith.addi %0, %arg1 : i32
    %c0_i32 = arith.constant 0 : i32
    %c0_i32_0 = arith.constant 0 : i32
    return %1, %c0_i32 : i32, i32
  }
  func.func @transform_3(%arg0: i32, %arg1: i32) -> (i32, i32, i32) {
    %c0_i32 = arith.constant 0 : i32
    %c0_i32_0 = arith.constant 0 : i32
    %c0_i32_1 = arith.constant 0 : i32
    return %arg0, %c0_i32, %c0_i32_0 : i32, i32, i32
  }
  func.func @transform_4(%arg0: i32, %arg1: i32) -> (i32, i32, i32) {
    %c0_i32 = arith.constant 0 : i32
    %c0_i32_0 = arith.constant 0 : i32
    %c0_i32_1 = arith.constant 0 : i32
    return %arg0, %c0_i32, %c0_i32_0 : i32, i32, i32
  }
}

</mosaic_0001>

<llo_original>
// kernel: masked_bce_with_logits_loss.1
$region0: #{masked_bce_with_logits_loss.1}
  #allocation0 [shape = 'u32[]', space=smem, size = 0x4, offset = 0x4, fixed_abs, tag = 'smem constant byte address 0x4 - core index']
  #allocation1 [shape = 'u32[144,128]{1,0:T(1,128)}', space=vmem, size = 0x12000, scoped, tag = 'internal scratch']
  #allocation2 [shape = 'f32[32,128]{1,0:T(8,128)}', space=vmem, size = 0x4000, scoped, tag = 'scratch operand']
  #allocation3 [shape = 'f32[32,128]{1,0:T(8,128)}', space=vmem, size = 0x4000, scoped, tag = 'scratch operand']
  %s0 = inlined_call_operand.vmem [shape: f32[64,128], index: 0, kind: input, shape index: {}]
  %s1 = inlined_call_operand.vmem [shape: f32[64,128], index: 1, kind: input, shape index: {}]
  %s2 = inlined_call_operand.vmem [shape: bf16[64,128], index: 2, kind: input, shape index: {}]
  %s3 = inlined_call_operand.vmem [shape: f32[2,1,128], index: 3, kind: output, shape index: {0}]
  %s4 = inlined_call_operand.vmem [shape: f32[2,1,128], index: 4, kind: output, shape index: {1}]
  %5 = xla_tuple %s3, %s4
  %s6 = sld [smem:[#allocation0]]
  $region61: #{masked_bce_with_logits_loss.1} parent=0
    _
  %s8 = ssub.s32 1, %s6
  %s9 = scalar_select 0, %s8, %s6
  loop: start=0, step=1, limit=4
  $region2: #{masked_bce_with_logits_loss.1} parent=0 // loop_pre_header
    _
  $region3: #{masked_bce_with_logits_loss.1} parent=0 // loop_header
    %s11 = sphi 0, %s15
    %p12 = scmp.ge.s32.totalorder %s11, 4
    %s18 = sphi 0, %s30
    %s19 = sphi 0, %s26
    %s20 = sphi 0, %s18
    %s21 = sphi 0, %s19
    %s22 = sphi 0, %s20
    %s23 = sphi 0, %s21
    %s35 = sphi 0, %s37
    %s38 = sphi 0, %s35
    %s39 = sphi 0, %s38
    %s55 = sphi 0, %s39
    %s63 = sphi 0, %s65
    %s66 = sphi 0, %s63
    %s67 = sphi 0, %s66
    %s83 = sphi 0, %s67
    %s91 = sphi 0, %s93
    %s94 = sphi 0, %s91
    %s95 = sphi 0, %s94
    %s111 = sphi 0, %s95
    %s117 = sphi 0, %s119
    %s120 = sphi 0, %s117
    %s121 = sphi 0, %s120
    %s137 = sphi 0, %s121
    %s143 = sphi 0, %s145
    %s146 = sphi 0, %s143
    %s147 = sphi 0, %s146
    %s163 = sphi 0, %s147
  $region4: #{masked_bce_with_logits_loss.1} parent=0 // loop_header_branch
    %14 = sbr.rel (%p12) target = $region8
  $region5: #{masked_bce_with_logits_loss.1} parent=0 // loop_body
    %s16 = ssub.s32 %s11, 1
    %s17 = ssub.s32 %s11, 2
    %s24 = sadd.s32 1, %s19
    %p25 = scmp.ge.s32.totalorder %s24, 1
    %s26 = scalar_select %p25, 0, %s24
    %s27 = sadd.s32 1, %s18
    %s28 = scalar_select %p25, %s27, %s18
    %p29 = scmp.ge.s32.totalorder %s28, 2
    %s30 = scalar_select %p29, 0, %s28
    %s31 = sadd.s32 %s18, %s19
    %s32 = sadd.s32 %s30, %s26
    %s33 = ssub.s32 %s31, %s32
    %p34 = scmp.eq.s32.totalorder %s33, 0
    %s36 = sadd.s32 %s35, 1
    %s37 = scalar_select %p34, %s35, %s36
    %p40 = pneg %p34
    %p41 = scmp.eq.s32.totalorder %s11, 1
    %p42 = por %p40, %p41
    %p43 = scmp.ne.s32.totalorder %s35, %s38
    %p44 = scmp.eq.s32.totalorder %s11, 0
    %p45 = por %p43, %p44
    %p46 = scmp.ne.s32.totalorder %s35, %s38
    %p47 = scmp.eq.s32.totalorder %s16, 1
    %p48 = por %p46, %p47
    %p49 = scmp.ne.s32.totalorder %s38, %s39
    %p50 = scmp.eq.s32.totalorder %s16, 0
    %p51 = por %p49, %p50
    %p52 = scmp.ne.s32.totalorder %s38, %s39
    %p53 = scmp.eq.s32.totalorder %s17, 1
    %p54 = por %p52, %p53
    %p56 = scmp.ne.s32.totalorder %s39, %s55
    %p57 = scmp.eq.s32.totalorder %s17, 0
    %p58 = por %p56, %p57
    %s59 = sadd.s32 %s18, %s19
    %s60 = sadd.s32 %s30, %s26
    %s61 = ssub.s32 %s59, %s60
    %p62 = scmp.eq.s32.totalorder %s61, 0
    %s64 = sadd.s32 %s63, 1
    %s65 = scalar_select %p62, %s63, %s64
    %p68 = pneg %p62
    %p69 = scmp.eq.s32.totalorder %s11, 1
    %p70 = por %p68, %p69
    %p71 = scmp.ne.s32.totalorder %s63, %s66
    %p72 = scmp.eq.s32.totalorder %s11, 0
    %p73 = por %p71, %p72
    %p74 = scmp.ne.s32.totalorder %s63, %s66
    %p75 = scmp.eq.s32.totalorder %s16, 1
    %p76 = por %p74, %p75
    %p77 = scmp.ne.s32.totalorder %s66, %s67
    %p78 = scmp.eq.s32.totalorder %s16, 0
    %p79 = por %p77, %p78
    %p80 = scmp.ne.s32.totalorder %s66, %s67
    %p81 = scmp.eq.s32.totalorder %s17, 1
    %p82 = por %p80, %p81
    %p84 = scmp.ne.s32.totalorder %s67, %s83
    %p85 = scmp.eq.s32.totalorder %s17, 0
    %p86 = por %p84, %p85
    %s87 = sadd.s32 %s18, %s19
    %s88 = sadd.s32 %s30, %s26
    %s89 = ssub.s32 %s87, %s88
    %p90 = scmp.eq.s32.totalorder %s89, 0
    %s92 = sadd.s32 %s91, 1
    %s93 = scalar_select %p90, %s91, %s92
    %p96 = pneg %p90
    %p97 = scmp.eq.s32.totalorder %s11, 1
    %p98 = por %p96, %p97
    %p99 = scmp.ne.s32.totalorder %s91, %s94
    %p100 = scmp.eq.s32.totalorder %s11, 0
    %p101 = por %p99, %p100
    %p102 = scmp.ne.s32.totalorder %s91, %s94
    %p103 = scmp.eq.s32.totalorder %s16, 1
    %p104 = por %p102, %p103
    %p105 = scmp.ne.s32.totalorder %s94, %s95
    %p106 = scmp.eq.s32.totalorder %s16, 0
    %p107 = por %p105, %p106
    %p108 = scmp.ne.s32.totalorder %s94, %s95
    %p109 = scmp.eq.s32.totalorder %s17, 1
    %p110 = por %p108, %p109
    %p112 = scmp.ne.s32.totalorder %s95, %s111
    %p113 = scmp.eq.s32.totalorder %s17, 0
    %p114 = por %p112, %p113
    %s115 = ssub.s32 %s18, %s30
    %p116 = scmp.eq.s32.totalorder %s115, 0
    %s118 = sadd.s32 %s117, 1
    %s119 = scalar_select %p116, %s117, %s118
    %p122 = pneg %p116
    %p123 = scmp.eq.s32.totalorder %s11, 1
    %p124 = por %p122, %p123
    %p125 = scmp.ne.s32.totalorder %s117, %s120
    %p126 = scmp.eq.s32.totalorder %s11, 0
    %p127 = por %p125, %p126
    %p128 = scmp.ne.s32.totalorder %s117, %s120
    %p129 = scmp.eq.s32.totalorder %s16, 1
    %p130 = por %p128, %p129
    %p131 = scmp.ne.s32.totalorder %s120, %s121
    %p132 = scmp.eq.s32.totalorder %s16, 0
    %p133 = por %p131, %p132
    %p134 = scmp.ne.s32.totalorder %s120, %s121
    %p135 = scmp.eq.s32.totalorder %s17, 1
    %p136 = por %p134, %p135
    %p138 = scmp.ne.s32.totalorder %s121, %s137
    %p139 = scmp.eq.s32.totalorder %s17, 0
    %p140 = por %p138, %p139
    %s141 = ssub.s32 %s18, %s30
    %p142 = scmp.eq.s32.totalorder %s141, 0
    %s144 = sadd.s32 %s143, 1
    %s145 = scalar_select %p142, %s143, %s144
    %p148 = pneg %p142
    %p149 = scmp.eq.s32.totalorder %s11, 1
    %p150 = por %p148, %p149
    %p151 = scmp.ne.s32.totalorder %s143, %s146
    %p152 = scmp.eq.s32.totalorder %s11, 0
    %p153 = por %p151, %p152
    %p154 = scmp.ne.s32.totalorder %s143, %s146
    %p155 = scmp.eq.s32.totalorder %s16, 1
    %p156 = por %p154, %p155
    %p157 = scmp.ne.s32.totalorder %s146, %s147
    %p158 = scmp.eq.s32.totalorder %s16, 0
    %p159 = por %p157, %p158
    %p160 = scmp.ne.s32.totalorder %s146, %s147
    %p161 = scmp.eq.s32.totalorder %s17, 1
    %p162 = por %p160, %p161
    %p164 = scmp.ne.s32.totalorder %s147, %s163
    %p165 = scmp.eq.s32.totalorder %s17, 0
    %p166 = por %p164, %p165
    %p167 = scmp.le.s32.totalorder 1, %s11
    %p168 = scmp.lt.s32.totalorder %s11, 3
    %p169 = pnand %p167, %p168
    %p170 = pneg %p169
    // Predicated region
    $region9: #{masked_bce_with_logits_loss.1} parent=5 // pred_check
      _
    $region10: #{masked_bce_with_logits_loss.1} parent=5 // pred_check_branch
      %172 = sbr.rel (%p169) target = $region12
    $region11: #{masked_bce_with_logits_loss.1} parent=5 // pred_region
      %s173 = ssub.s32 %s11, 1
    $region12: #{masked_bce_with_logits_loss.1} parent=5 // pred_fallthru
      _
    %p174 = scmp.lt.s32.totalorder %s11, 2
    // Predicated region
    $region13: #{masked_bce_with_logits_loss.1} parent=5 // pred_check
      %p175 = pneg %p174
    $region14: #{masked_bce_with_logits_loss.1} parent=5 // pred_check_branch
      %177 = sbr.rel (%p175) target = $region16
    $region15: #{masked_bce_with_logits_loss.1} parent=5 // pred_region
      // Predicated region
      $region17: #{masked_bce_with_logits_loss.1} parent=15 // pred_check
        %p178 = pneg %p45
      $region18: #{masked_bce_with_logits_loss.1} parent=15 // pred_check_branch
        %180 = sbr.rel (%p178) target = $region20
      $region19: #{masked_bce_with_logits_loss.1} parent=15 // pred_region
        %s181 = sadd.s32 %s18, %s19
        %s182 = smul.u32 4, %s181
        %p183 = scmp.lt.s32.totalorder %s182, 7
        %s184 = scalar_select %p183, %s182, 7
        %s185 = smul.addr %s184, 8
        %s186 = scalar_lea.vmem %s0, %s185
        %s187 = sadd.s32 %s18, %s19
        %s188 = smul.u32 4, %s187
      $region20: #{masked_bce_with_logits_loss.1} parent=15 // pred_fallthru
        _
      // Predicated region
      $region21: #{masked_bce_with_logits_loss.1} parent=15 // pred_check
        %p189 = pneg %p73
      $region22: #{masked_bce_with_logits_loss.1} parent=15 // pred_check_branch
        %191 = sbr.rel (%p189) target = $region24
      $region23: #{masked_bce_with_logits_loss.1} parent=15 // pred_region
        %s192 = sadd.s32 %s18, %s19
        %s193 = smul.u32 4, %s192
        %p194 = scmp.lt.s32.totalorder %s193, 7
        %s195 = scalar_select %p194, %s193, 7
        %s196 = smul.addr %s195, 8
        %s197 = scalar_lea.vmem %s1, %s196
        %s198 = sadd.s32 %s18, %s19
        %s199 = smul.u32 4, %s198
      $region24: #{masked_bce_with_logits_loss.1} parent=15 // pred_fallthru
        _
      // Predicated region
      $region25: #{masked_bce_with_logits_loss.1} parent=15 // pred_check
        %p200 = pneg %p101
      $region26: #{masked_bce_with_logits_loss.1} parent=15 // pred_check_branch
        %202 = sbr.rel (%p200) target = $region28
      $region27: #{masked_bce_with_logits_loss.1} parent=15 // pred_region
        %s203 = sadd.s32 %s18, %s19
        %s204 = smul.u32 4, %s203
        %p205 = scmp.lt.s32.totalorder %s204, 7
        %s206 = scalar_select %p205, %s204, 7
        %s207 = smul.addr %s206, 4
        %s208 = scalar_lea.vmem %s2, %s207
        %s209 = sadd.s32 %s18, %s19
        %s210 = smul.u32 4, %s209
      $region28: #{masked_bce_with_logits_loss.1} parent=15 // pred_fallthru
        _
    $region16: #{masked_bce_with_logits_loss.1} parent=5 // pred_fallthru
      _
    %p211 = scmp.le.s32.totalorder 1, %s11
    %p212 = scmp.lt.s32.totalorder %s11, 3
    %p213 = pnand %p211, %p212
    %p214 = pneg %p213
    // Predicated region
    $region29: #{masked_bce_with_logits_loss.1} parent=5 // pred_check
      _
    $region30: #{masked_bce_with_logits_loss.1} parent=5 // pred_check_branch
      %216 = sbr.rel (%p213) target = $region32
    $region31: #{masked_bce_with_logits_loss.1} parent=5 // pred_region
      %s217 = ssub.s32 %s11, 1
      %s218 = sadd.s32 %s20, %s21
      %s219 = smul.u32 4, %s218
      %p220 = scmp.lt.s32.totalorder %s219, 7
      %s221 = scalar_select %p220, %s219, 7
      %s222 = smul.addr %s221, 8
      %s223 = scalar_lea.vmem %s0, %s222
      %p224 = pneg %p51
      %p225 = pneg %p48
      %s226 = sadd.s32 %s20, %s21
      %s227 = smul.u32 4, %s226
      %p228 = scmp.lt.s32.totalorder %s227, 7
      %s229 = scalar_select %p228, %s227, 7
      %s230 = smul.addr %s229, 8
      %s231 = scalar_lea.vmem %s1, %s230
      %p232 = pneg %p79
      %p233 = pneg %p76
      %s234 = sadd.s32 %s20, %s21
      %s235 = smul.u32 4, %s234
      %p236 = scmp.lt.s32.totalorder %s235, 7
      %s237 = scalar_select %p236, %s235, 7
      %s238 = smul.addr %s237, 4
      %s239 = scalar_lea.vmem %s2, %s238
      %p240 = pneg %p107
      %p241 = pneg %p104
      %p242 = pneg %p133
      %p243 = pneg %p130
      %p244 = scmp.lt.s32.totalorder %s20, 1
      %s245 = scalar_select %p244, %s20, 1
      %s246 = scalar_lea.vmem %s3, %s245
      %p247 = pneg %p159
      %p248 = pneg %p156
      %p249 = scmp.lt.s32.totalorder %s20, 1
      %s250 = scalar_select %p249, %s20, 1
      %s251 = scalar_lea.vmem %s4, %s250
      %s252 = sadd.s32 %s20, %s21
      %s253 = smul.u32 4, %s252
      %p254 = scmp.lt.s32.totalorder %s253, 7
      %s255 = scalar_select %p254, %s253, 7
      %s256 = smul.addr %s255, 8
      %s257 = scalar_lea.vmem %s0, %s256
      %s258 = sadd.s32 %s20, %s21
      %s259 = smul.u32 4, %s258
      %s260 = sadd.s32 %s20, %s21
      %s261 = smul.u32 4, %s260
      %p262 = scmp.lt.s32.totalorder %s261, 7
      %s263 = scalar_select %p262, %s261, 7
      %s264 = smul.addr %s263, 8
      %s265 = scalar_lea.vmem %s1, %s264
      %s266 = sadd.s32 %s20, %s21
      %s267 = smul.u32 4, %s266
      %s268 = sadd.s32 %s20, %s21
      %s269 = smul.u32 4, %s268
      %p270 = scmp.lt.s32.totalorder %s269, 7
      %s271 = scalar_select %p270, %s269, 7
      %s272 = smul.addr %s271, 4
      %s273 = scalar_lea.vmem %s2, %s272
      %s274 = sadd.s32 %s20, %s21
      %s275 = smul.u32 4, %s274
      %p276 = scmp.lt.s32.totalorder %s20, 1
      %s277 = scalar_select %p276, %s20, 1
      %s278 = scalar_lea.vmem %s3, %s277
      %p279 = scmp.lt.s32.totalorder %s20, 1
      %s280 = scalar_select %p279, %s20, 1
      %s281 = scalar_lea.vmem %s4, %s280
      %p282 = scmp.eq.s32.totalorder %s21, 0
      // Predicated region
      $region33: #{masked_bce_with_logits_loss.1} parent=31 // pred_check
        %p283 = pneg %p282
      $region34: #{masked_bce_with_logits_loss.1} parent=31 // pred_check_branch
        %285 = sbr.rel (%p283) target = $region36
      $region35: #{masked_bce_with_logits_loss.1} parent=31 // pred_region
        %286 = vst [vmem:[#allocation2] sm:$0xff] 0.0
        %287 = vst [vmem:[#allocation2 + $0x8] sm:$0xff] 0.0
        %288 = vst [vmem:[#allocation2 + $0x10] sm:$0xff] 0.0
        %289 = vst [vmem:[#allocation2 + $0x18] sm:$0xff] 0.0
        %290 = vst [vmem:[#allocation3] sm:$0xff] 0.0
        %291 = vst [vmem:[#allocation3 + $0x8] sm:$0xff] 0.0
        %292 = vst [vmem:[#allocation3 + $0x10] sm:$0xff] 0.0
        %293 = vst [vmem:[#allocation3 + $0x18] sm:$0xff] 0.0
      $region36: #{masked_bce_with_logits_loss.1} parent=31 // pred_fallthru
        _
      %v294 = vld [vmem:[%s273] sm:$0xf]
      %v295 = vld [vmem:[%s273 + $0x4] sm:$0xf]
      %v296 = vld [vmem:[%s273 + $0x8] sm:$0xf]
      %v297 = vld [vmem:[%s273 + $0xc] sm:$0xf]
      %v298 = vunpack.c.l.bf16 %v294
      %v299 = vunpack.c.l.bf16 %v295
      %v300 = vunpack.c.l.bf16 %v296
      %v301 = vunpack.c.l.bf16 %v297
      %v302 = vand.u32 2147483647, %v298
      %v303 = vand.u32 2147483647, %v299
      %v304 = vand.u32 2147483647, %v300
      %v305 = vand.u32 2147483647, %v301
      %v306 = vld [vmem:[%s257] sm:$0xff]
      %v307 = vld [vmem:[%s257 + $0x8] sm:$0xff]
      %v308 = vld [vmem:[%s257 + $0x10] sm:$0xff]
      %v309 = vld [vmem:[%s257 + $0x18] sm:$0xff]
      %v310 = vld [vmem:[%s265] sm:$0xff]
      %v311 = vld [vmem:[%s265 + $0x8] sm:$0xff]
      %v312 = vld [vmem:[%s265 + $0x10] sm:$0xff]
      %v313 = vld [vmem:[%s265 + $0x18] sm:$0xff]
      %v314 = vsub.f32 %v306, %v310
      %v315 = vsub.f32 %v307, %v311
      %v316 = vsub.f32 %v308, %v312
      %v317 = vsub.f32 %v309, %v313
      %v318 = vmul.f32 %v298, %v314
      %v319 = vmul.f32 %v299, %v315
      %v320 = vmul.f32 %v300, %v316
      %v321 = vmul.f32 %v301, %v317
      %v322 = vmax.f32 %v318, 0.0
      %v323 = vmax.f32 %v319, 0.0
      %v324 = vmax.f32 %v320, 0.0
      %v325 = vmax.f32 %v321, 0.0
      %v326 = vand.u32 2147483647, %v318
      %v327 = vand.u32 2147483647, %v319
      %v328 = vand.u32 2147483647, %v320
      %v329 = vand.u32 2147483647, %v321
      %v330 = vsub.f32 0.0, %v326
      %v331 = vsub.f32 0.0, %v327
      %v332 = vsub.f32 0.0, %v328
      %v333 = vsub.f32 0.0, %v329
      %v334 = vmul.f32 %v330, 1.442695
      %v335 = vpow.pop %v334
      %v336 = vmul.f32 %v331, 1.442695
      %v337 = vpow.pop %v336
      %v338 = vmul.f32 %v332, 1.442695
      %v339 = vpow.pop %v338
      %v340 = vmul.f32 %v333, 1.442695
      %v341 = vpow.pop %v340
      %v342 = vadd.f32 %v335, 1.0
      %v343 = vadd.f32 %v337, 1.0
      %v344 = vadd.f32 %v339, 1.0
      %v345 = vadd.f32 %v341, 1.0
      %v346 = vlog2.pop %v342
      %v347 = vmul.f32 %v346, 0.6931472
      %v348 = vlog2.pop %v343
      %v349 = vmul.f32 %v348, 0.6931472
      %v350 = vlog2.pop %v344
      %v351 = vmul.f32 %v350, 0.6931472
      %v352 = vlog2.pop %v345
      %v353 = vmul.f32 %v352, 0.6931472
      %v354 = vadd.f32 %v322, %v347
      %v355 = vadd.f32 %v323, %v349
      %v356 = vadd.f32 %v324, %v351
      %v357 = vadd.f32 %v325, %v353
      %v358 = vmul.f32 %v354, %v302
      %v359 = vmul.f32 %v355, %v303
      %v360 = vmul.f32 %v356, %v304
      %v361 = vmul.f32 %v357, %v305
      %v362 = vld [vmem:[#allocation2] sm:$0xff]
      %v363 = vld [vmem:[#allocation2 + $0x8] sm:$0xff]
      %v364 = vld [vmem:[#allocation2 + $0x10] sm:$0xff]
      %v365 = vld [vmem:[#allocation2 + $0x18] sm:$0xff]
      %v366 = vadd.f32 %v362, %v358
      %v367 = vadd.f32 %v363, %v359
      %v368 = vadd.f32 %v364, %v360
      %v369 = vadd.f32 %v365, %v361
      %370 = vst [vmem:[#allocation2] sm:$0xff] %v366
      %371 = vst [vmem:[#allocation2 + $0x8] sm:$0xff] %v367
      %372 = vst [vmem:[#allocation2 + $0x10] sm:$0xff] %v368
      %373 = vst [vmem:[#allocation2 + $0x18] sm:$0xff] %v369
      %v374 = vld [vmem:[#allocation3] sm:$0xff]
      %v375 = vld [vmem:[#allocation3 + $0x8] sm:$0xff]
      %v376 = vld [vmem:[#allocation3 + $0x10] sm:$0xff]
      %v377 = vld [vmem:[#allocation3 + $0x18] sm:$0xff]
      %v378 = vadd.f32 %v374, %v302
      %v379 = vadd.f32 %v375, %v303
      %v380 = vadd.f32 %v376, %v304
      %v381 = vadd.f32 %v377, %v305
      %382 = vst [vmem:[#allocation3] sm:$0xff] %v378
      %383 = vst [vmem:[#allocation3 + $0x8] sm:$0xff] %v379
      %384 = vst [vmem:[#allocation3 + $0x10] sm:$0xff] %v380
      %385 = vst [vmem:[#allocation3 + $0x18] sm:$0xff] %v381
      // Predicated region
      $region37: #{masked_bce_with_logits_loss.1} parent=31 // pred_check
        %p386 = pneg %p282
      $region38: #{masked_bce_with_logits_loss.1} parent=31 // pred_check_branch
        %388 = sbr.rel (%p386) target = $region40
      $region39: #{masked_bce_with_logits_loss.1} parent=31 // pred_region
        %v389 = vld [vmem:[#allocation2] sm:$0xff]
        %v390 = vld [vmem:[#allocation2 + $0x8] sm:$0xff]
        %v391 = vld [vmem:[#allocation2 + $0x10] sm:$0xff]
        %v392 = vld [vmem:[#allocation2 + $0x18] sm:$0xff]
        %v393 = vadd.f32 %v389, %v390
        %v394 = vadd.f32 %v393, %v391
        %v395 = vadd.f32 %v394, %v392
        %v396 = vrot.slane %v395, 4
        %v397 = vadd.f32 %v395, %v396
        %v398 = vrot.slane %v397, 2
        %v399 = vadd.f32 %v397, %v398
        %v400 = vrot.slane %v399, 1
        %v401 = vadd.f32 %v399, %v400
        %402 = vst [vmem:[%s278] sm:$0x1] %v401
        %v403 = vld [vmem:[#allocation3] sm:$0xff]
        %v404 = vld [vmem:[#allocation3 + $0x8] sm:$0xff]
        %v405 = vld [vmem:[#allocation3 + $0x10] sm:$0xff]
        %v406 = vld [vmem:[#allocation3 + $0x18] sm:$0xff]
        %v407 = vadd.f32 %v403, %v404
        %v408 = vadd.f32 %v407, %v405
        %v409 = vadd.f32 %v408, %v406
        %v410 = vrot.slane %v409, 4
        %v411 = vadd.f32 %v409, %v410
        %v412 = vrot.slane %v411, 2
        %v413 = vadd.f32 %v411, %v412
        %v414 = vrot.slane %v413, 1
        %v415 = vadd.f32 %v413, %v414
        %416 = vst [vmem:[%s281] sm:$0x1] %v415
      $region40: #{masked_bce_with_logits_loss.1} parent=31 // pred_fallthru
        _
      %p417 = scmp.lt.s32.totalorder %s20, 1
      %s418 = scalar_select %p417, %s20, 1
      %s419 = scalar_lea.vmem %s3, %s418
      %p420 = scmp.lt.s32.totalorder %s20, 1
      %s421 = scalar_select %p420, %s20, 1
      %s422 = scalar_lea.vmem %s4, %s421
      // Predicated region
      $region41: #{masked_bce_with_logits_loss.1} parent=31 // pred_check
        %p423 = pneg %p130
      $region42: #{masked_bce_with_logits_loss.1} parent=31 // pred_check_branch
        %425 = sbr.rel (%p423) target = $region44
      $region43: #{masked_bce_with_logits_loss.1} parent=31 // pred_region
        _
      $region44: #{masked_bce_with_logits_loss.1} parent=31 // pred_fallthru
        _
      // Predicated region
      $region45: #{masked_bce_with_logits_loss.1} parent=31 // pred_check
        %p426 = pneg %p156
      $region46: #{masked_bce_with_logits_loss.1} parent=31 // pred_check_branch
        %428 = sbr.rel (%p426) target = $region48
      $region47: #{masked_bce_with_logits_loss.1} parent=31 // pred_region
        _
      $region48: #{masked_bce_with_logits_loss.1} parent=31 // pred_fallthru
        _
    $region32: #{masked_bce_with_logits_loss.1} parent=5 // pred_fallthru
      _
    %p429 = scmp.le.s32.totalorder 2, %s11
    // Predicated region
    $region49: #{masked_bce_with_logits_loss.1} parent=5 // pred_check
      %p430 = pneg %p429
    $region50: #{masked_bce_with_logits_loss.1} parent=5 // pred_check_branch
      %432 = sbr.rel (%p430) target = $region52
    $region51: #{masked_bce_with_logits_loss.1} parent=5 // pred_region
      %s433 = ssub.s32 %s11, 2
      // Predicated region
      $region53: #{masked_bce_with_logits_loss.1} parent=51 // pred_check
        %p434 = pneg %p136
      $region54: #{masked_bce_with_logits_loss.1} parent=51 // pred_check_branch
        %436 = sbr.rel (%p434) target = $region56
      $region55: #{masked_bce_with_logits_loss.1} parent=51 // pred_region
        %p437 = scmp.lt.s32.totalorder %s22, 1
        %s438 = scalar_select %p437, %s22, 1
        %s439 = scalar_lea.vmem %s3, %s438
      $region56: #{masked_bce_with_logits_loss.1} parent=51 // pred_fallthru
        _
      // Predicated region
      $region57: #{masked_bce_with_logits_loss.1} parent=51 // pred_check
        %p440 = pneg %p162
      $region58: #{masked_bce_with_logits_loss.1} parent=51 // pred_check_branch
        %442 = sbr.rel (%p440) target = $region60
      $region59: #{masked_bce_with_logits_loss.1} parent=51 // pred_region
        %p443 = scmp.lt.s32.totalorder %s22, 1
        %s444 = scalar_select %p443, %s22, 1
        %s445 = scalar_lea.vmem %s4, %s444
      $region60: #{masked_bce_with_logits_loss.1} parent=51 // pred_fallthru
        _
    $region52: #{masked_bce_with_logits_loss.1} parent=5 // pred_fallthru
      _
  $region6: #{masked_bce_with_logits_loss.1} parent=0 // loop_footer
    %s15 = sadd.s32 1, %s11
  $region7: #{masked_bce_with_logits_loss.1} parent=0 // loop_footer_branch
    %10 = sbr.rel target = $region3
  $region8: #{masked_bce_with_logits_loss.1} parent=0 // loop_exit
    _

</llo_original>
